<compile_context>
chip_gen: v7x
topology: tpu7x:2x2x1
jax: 0.10.0
libtpu: 0.0.40
codegen_flags: <defaults>
</compile_context>

<pallas_src>
import functools

import jax
import jax.numpy as jnp
from jax.experimental import pallas as pl
from jax.experimental.pallas import tpu as pltpu


def _round_up(x, n):
    return ((x + n - 1) // n) * n


@functools.lru_cache(maxsize=1)
def _vmem_capacity_bytes():
    """Per-TensorCore VMEM capacity; falls back to the v7x 64 MiB floor."""
    try:
        return int(pltpu.get_tpu_info().vmem_capacity_bytes)
    except Exception:
        return 64 << 20


# ---------------------------------------------------------------------------
# Kernels
# ---------------------------------------------------------------------------

def _mlp_resident_kernel(x_ref, w1_ref, b1_ref, w2_ref, b2_ref, o_ref):
    """Both weight matrices resident in VMEM; one batch tile per grid step."""
    x = x_ref[...]
    h = jnp.dot(x, w1_ref[...], preferred_element_type=jnp.float32)
    h = jnp.maximum(h + b1_ref[...], 0.0)          # bias + ReLU in f32 (VPU)
    h = h.astype(x.dtype)                          # MXU operand dtype
    y = jnp.dot(h, w2_ref[...], preferred_element_type=jnp.float32)
    y = jnp.maximum(y + b2_ref[...], 0.0)
    o_ref[...] = y.astype(o_ref.dtype)


def _mlp_hidden_tiled_kernel(x_ref, w1_ref, b1_ref, w2_ref, b2_ref, o_ref,
                             acc_ref):
    """Hidden dim tiled: accumulate relu(x@W1c + b1c) @ W2c over H chunks."""
    h_idx = pl.program_id(1)

    @pl.when(h_idx == 0)
    def _():
        acc_ref[...] = jnp.zeros_like(acc_ref)

    x = x_ref[...]
    hc = jnp.dot(x, w1_ref[...], preferred_element_type=jnp.float32)
    hc = jnp.maximum(hc + b1_ref[...], 0.0).astype(x.dtype)
    acc_ref[...] += jnp.dot(hc, w2_ref[...], preferred_element_type=jnp.float32)

    @pl.when(h_idx == pl.num_programs(1) - 1)
    def _():
        y = jnp.maximum(acc_ref[...] + b2_ref[...], 0.0)
        o_ref[...] = y.astype(o_ref.dtype)


# ---------------------------------------------------------------------------
# VMEM budgeting / tile selection
# ---------------------------------------------------------------------------

def _resident_vmem_bytes(block_m, d_in, d_h, d_out, in_bytes, out_bytes,
                         single_buffer_weights):
    wbuf = 1 if single_buffer_weights else 2
    x_tile = 2 * block_m * d_in * in_bytes               # double-buffered in
    o_tile = 2 * block_m * d_out * out_bytes             # double-buffered out
    weights = wbuf * (d_in * d_h + d_h * d_out) * in_bytes
    biases = wbuf * (d_h + d_out) * 4
    inter = block_m * d_h * (4 + in_bytes)                # f32 h + downcast
    return x_tile + o_tile + weights + biases + inter


def _tiled_vmem_bytes(block_m, d_in, block_h, d_out, in_bytes, out_bytes):
    x_tile = 2 * block_m * d_in * in_bytes
    o_tile = 2 * block_m * d_out * out_bytes
    weights = 2 * (d_in * block_h + block_h * d_out) * in_bytes
    biases = 2 * block_h * 4 + d_out * 4
    acc = block_m * d_out * 4
    inter = block_m * block_h * (4 + in_bytes)
    return x_tile + o_tile + weights + biases + acc + inter


_BLOCK_M_CANDIDATES = (8, 16, 32, 64, 128, 256, 512)


def _choose_block_m(m, vmem_fn, budget):
    best = 8
    for bm in _BLOCK_M_CANDIDATES:
        if vmem_fn(bm) > budget:
            break
        best = bm
        if bm >= m:
            break
    return best


# ---------------------------------------------------------------------------
# Wrapper
# ---------------------------------------------------------------------------

@functools.partial(
    jax.jit,
    static_argnames=("block_m", "block_h", "use_bf16_mxu",
                     "single_buffer_weights"))
def _mlp_pallas_impl(x, w1, b1, w2, b2, *, block_m, block_h, use_bf16_mxu,
                     single_buffer_weights):
    out_dtype = x.dtype
    m, d_in = x.shape
    d_hidden = w1.shape[1]
    d_out = w2.shape[1]

    if use_bf16_mxu:
        # MXU-native operand dtype on v5e/v6e/v7x; f32 accumulation below.
        x = x.astype(jnp.bfloat16)
        w1 = w1.astype(jnp.bfloat16)
        w2 = w2.astype(jnp.bfloat16)
    b1 = b1.reshape(1, d_hidden).astype(jnp.float32)
    b2 = b2.reshape(1, d_out).astype(jnp.float32)

    in_bytes = x.dtype.itemsize
    out_bytes = jnp.dtype(out_dtype).itemsize

    vmem_cap = _vmem_capacity_bytes()
    budget = min((3 * vmem_cap) // 4, 100 << 20)     # tile-selection budget
    vmem_limit = int(max(budget, 32 << 20))

    # Sublane alignment only: pad at most 7 rows.  The ragged last *block* is
    # masked by Pallas, so no pad up to a block_m multiple is needed.
    m_pad = _round_up(max(m, 1), 8)
    if m_pad != m:
        x = jnp.pad(x, ((0, m_pad - m), (0, 0)))

    wkw = dict(pipeline_mode=pl.Buffered(1)) if single_buffer_weights else {}

    resident_fits = (
        _resident_vmem_bytes(min(128, m_pad), d_in, d_hidden, d_out, in_bytes,
                             out_bytes, single_buffer_weights) <= budget)

    if block_h is None and resident_fits:
        # ---- resident-weights path (default shapes) -----------------------
        if block_m is None:
            block_m = _choose_block_m(
                m_pad,
                lambda bm: _resident_vmem_bytes(
                    bm, d_in, d_hidden, d_out, in_bytes, out_bytes,
                    single_buffer_weights),
                budget)
        block_m = min(_round_up(max(int(block_m), 8), 8), m_pad)
        grid = (pl.cdiv(m_pad, block_m),)
        in_specs = [
            pl.BlockSpec((block_m, d_in), lambda i: (i, 0)),
            pl.BlockSpec((d_in, d_hidden), lambda i: (0, 0), **wkw),
            pl.BlockSpec((1, d_hidden), lambda i: (0, 0), **wkw),
            pl.BlockSpec((d_hidden, d_out), lambda i: (0, 0), **wkw),
            pl.BlockSpec((1, d_out), lambda i: (0, 0), **wkw),
        ]
        out_spec = pl.BlockSpec((block_m, d_out), lambda i: (i, 0))
        kernel = _mlp_resident_kernel
        scratch = ()
        dims = ("parallel",) if grid[0] > 1 else ("arbitrary",)
    else:
        # ---- hidden-dim-tiled path (large H, or forced via block_h) -------
        block_h = 512 if block_h is None else _round_up(int(block_h), 128)
        h_pad = _round_up(d_hidden, block_h)
        if h_pad != d_hidden:
            # Zero-padding the hidden dim is exact: relu(0) @ 0-rows adds 0.
            w1 = jnp.pad(w1, ((0, 0), (0, h_pad - d_hidden)))
            b1 = jnp.pad(b1, ((0, 0), (0, h_pad - d_hidden)))
            w2 = jnp.pad(w2, ((0, h_pad - d_hidden), (0, 0)))
        if block_m is None:
            block_m = _choose_block_m(
                m_pad,
                lambda bm: _tiled_vmem_bytes(bm, d_in, block_h, d_out,
                                             in_bytes, out_bytes),
                budget)
        block_m = min(_round_up(max(int(block_m), 8), 8), m_pad)
        grid = (pl.cdiv(m_pad, block_m), h_pad // block_h)
        in_specs = [
            pl.BlockSpec((block_m, d_in), lambda i, h: (i, 0)),
            pl.BlockSpec((d_in, block_h), lambda i, h: (0, h)),
            pl.BlockSpec((1, block_h), lambda i, h: (0, h)),
            pl.BlockSpec((block_h, d_out), lambda i, h: (h, 0)),
            pl.BlockSpec((1, d_out), lambda i, h: (0, 0), **wkw),
        ]
        out_spec = pl.BlockSpec((block_m, d_out), lambda i, h: (i, 0))
        kernel = _mlp_hidden_tiled_kernel
        scratch = (pltpu.VMEM((block_m, d_out), jnp.float32),)
        dims = ("parallel", "arbitrary")   # reduction (H) axis last

    flops = 2 * m_pad * (d_in * d_hidden + d_hidden * d_out)
    bytes_accessed = (
        m_pad * d_in * in_bytes
        + (d_in * d_hidden + d_hidden * d_out) * in_bytes
        + (d_hidden + d_out) * 4
        + m_pad * d_out * out_bytes)

    out = pl.pallas_call(
        kernel,
        out_shape=jax.ShapeDtypeStruct((m_pad, d_out), out_dtype),
        grid_spec=pltpu.PrefetchScalarGridSpec(
            num_scalar_prefetch=0,
            grid=grid,
            in_specs=in_specs,
            out_specs=out_spec,
            scratch_shapes=scratch,
        ),
        compiler_params=pltpu.CompilerParams(
            dimension_semantics=dims,
            vmem_limit_bytes=vmem_limit,
        ),
        cost_estimate=pl.CostEstimate(
            flops=flops, transcendentals=0, bytes_accessed=bytes_accessed),
    )(x, w1, b1, w2, b2)

    if m_pad != m:
        out = out[:m]
    return out


_SINGLE_BUFFER_WEIGHTS = True   # flipped off once if this Pallas build rejects
                                # pipeline_mode=pl.Buffered(1)


def mlp_pallas(x, w1, b1, w2, b2, *, block_m=None, block_h=None,
               use_bf16_mxu=True):
    """Fused MLP forward.  x: (..., D_in); w1: (D_in, H); w2: (H, D_out).

    b1 / b2 may be None (matches MLP(no_biases=True))."""
    global _SINGLE_BUFFER_WEIGHTS
    d_in = x.shape[-1]
    d_hidden = w1.shape[1]
    d_out = w2.shape[1]
    if b1 is None:
        b1 = jnp.zeros((d_hidden,), jnp.float32)
    if b2 is None:
        b2 = jnp.zeros((d_out,), jnp.float32)

    lead = x.shape[:-1]
    x2 = x.reshape(-1, d_in)

    kwargs = dict(block_m=block_m, block_h=block_h, use_bf16_mxu=use_bf16_mxu)
    try:
        out = _mlp_pallas_impl(x2, w1, b1, w2, b2,
                               single_buffer_weights=_SINGLE_BUFFER_WEIGHTS,
                               **kwargs)
    except Exception:
        if not _SINGLE_BUFFER_WEIGHTS:
            raise
        # This Pallas/Mosaic build rejected single-buffered weight specs; fall
        # back to the default double-buffered pipeline (correctness first).
        _SINGLE_BUFFER_WEIGHTS = False
        out = _mlp_pallas_impl(x2, w1, b1, w2, b2,
                               single_buffer_weights=False, **kwargs)
    return out.reshape(*lead, d_out)


# ---------------------------------------------------------------------------
# References
# ---------------------------------------------------------------------------

def mlp_reference(x, w1, b1, w2, b2):
    h = jnp.maximum(jnp.dot(x, w1, precision="highest") + b1, 0.0)
    return jnp.maximum(jnp.dot(h, w2, precision="highest") + b2, 0.0)


def mlp_reference_mixed(x, w1, b1, w2, b2, compute_dtype=jnp.bfloat16):
    """Mirrors the kernel's default path: compute_dtype MXU operands, f32
    accumulation, f32 bias/ReLU, intermediate downcast, output in x.dtype."""
    f32 = jnp.float32
    xc = x.astype(compute_dtype).astype(f32)
    w1c = w1.astype(compute_dtype).astype(f32)
    w2c = w2.astype(compute_dtype).astype(f32)
    h = jnp.dot(xc, w1c, precision="highest") + b1.astype(f32)
    h = jnp.maximum(h, 0.0).astype(compute_dtype).astype(f32)
    y = jnp.dot(h, w2c, precision="highest") + b2.astype(f32)
    return jnp.maximum(y, 0.0).astype(x.dtype)


if __name__ == "__main__":
    # Small shapes consistent with MLP(input_dim, hidden_dim, output_dim).
    batch, input_dim, hidden_dim, output_dim = 48, 128, 256, 128

    key = jax.random.PRNGKey(0)
    kx, kw1, kb1, kw2, kb2 = jax.random.split(key, 5)

    x = jax.random.normal(kx, (batch, input_dim), dtype=jnp.float32)
    # Deterministic init mimicking nn.Linear's uniform(-1/sqrt(fan_in), ...).
    lim1 = 1.0 / (input_dim ** 0.5)
    w1 = jax.random.uniform(kw1, (input_dim, hidden_dim), jnp.float32, -lim1, lim1)
    b1 = jax.random.uniform(kb1, (hidden_dim,), jnp.float32, -lim1, lim1)
    lim2 = 1.0 / (hidden_dim ** 0.5)
    w2 = jax.random.uniform(kw2, (hidden_dim, output_dim), jnp.float32, -lim2, lim2)
    b2 = jax.random.uniform(kb2, (output_dim,), jnp.float32, -lim2, lim2)

    ref_f32 = mlp_reference(x, w1, b1, w2, b2)
    ref_bf16 = mlp_reference_mixed(x, w1, b1, w2, b2)

    # 1) Default path: bf16 MXU operands, f32 accumulation, resident weights.
    out = jax.block_until_ready(mlp_pallas(x, w1, b1, w2, b2))
    assert out.shape == (batch, output_dim) and out.dtype == jnp.float32
    assert jnp.allclose(out, ref_bf16, atol=5e-3, rtol=5e-3), "bf16 path mismatch"
    assert jnp.allclose(out, ref_f32, atol=8e-2, rtol=8e-2), "bf16 path far from f32 ref"

    # 2) Exact f32 MXU path.
    out_f32 = jax.block_until_ready(
        mlp_pallas(x, w1, b1, w2, b2, use_bf16_mxu=False))
    assert jnp.allclose(out_f32, ref_f32, atol=1e-3, rtol=1e-3), "f32 path mismatch"

    # 3) Hidden-dim-tiled path (forced via block_h) — used automatically when
    #    W1/W2 are too large to stay resident in VMEM.
    out_tiled = jax.block_until_ready(mlp_pallas(x, w1, b1, w2, b2, block_h=128))
    assert jnp.allclose(out_tiled, ref_bf16, atol=5e-3, rtol=5e-3), "tiled path mismatch"

    # 4) Batch not a multiple of 8 (only a <=7-row sublane pad, no block pad).
    xr = x[:20]
    out_r = jax.block_until_ready(mlp_pallas(xr, w1, b1, w2, b2))
    assert out_r.shape == (20, output_dim)
    assert jnp.allclose(out_r, ref_bf16[:20], atol=5e-3, rtol=5e-3), "ragged batch mismatch"

    print("KERNEL_OK")
</pallas_src>

<mosaic_0001>
module attributes {stable_mosaic.version = 11 : i64} {
  func.func @_mlp_resident_kernel(%arg0: i32, %arg1: memref<48x128xbf16, #tpu.memory_space<vmem>>, %arg2: memref<128x256xbf16, #tpu.memory_space<vmem>>, %arg3: memref<1x256xf32, #tpu.memory_space<vmem>>, %arg4: memref<256x128xbf16, #tpu.memory_space<vmem>>, %arg5: memref<1x128xf32, #tpu.memory_space<vmem>>, %arg6: memref<48x128xf32, #tpu.memory_space<vmem>>) attributes {dimension_semantics = [#tpu.dimension_semantics<arbitrary>], iteration_bounds = array<i64: 1>, scalar_prefetch = 0 : i64, scratch_operands = 0 : i64, tpu.core_type = #tpu.core_type<tc>, window_params = [{transform_indices = @transform_0, window_bounds = array<i64: 48, 128>}, {pipeline_mode = #tpu.pipeline_mode<synchronous>, transform_indices = @transform_1, window_bounds = array<i64: 128, 256>}, {pipeline_mode = #tpu.pipeline_mode<synchronous>, transform_indices = @transform_2, window_bounds = array<i64: 1, 256>}, {pipeline_mode = #tpu.pipeline_mode<synchronous>, transform_indices = @transform_3, window_bounds = array<i64: 256, 128>}, {pipeline_mode = #tpu.pipeline_mode<synchronous>, transform_indices = @transform_4, window_bounds = array<i64: 1, 128>}, {transform_indices = @transform_5, window_bounds = array<i64: 48, 128>}]} {
    %c0 = arith.constant 0 : index
    %c0_0 = arith.constant 0 : index
    %0 = vector.load %arg1[%c0, %c0_0] : memref<48x128xbf16, #tpu.memory_space<vmem>>, vector<48x128xbf16>
    %c0_1 = arith.constant 0 : index
    %c0_2 = arith.constant 0 : index
    %1 = vector.load %arg2[%c0_1, %c0_2] : memref<128x256xbf16, #tpu.memory_space<vmem>>, vector<128x256xbf16>
    %cst = arith.constant dense<0.000000e+00> : vector<48x256xf32>
    %2 = tpu.matmul %0, %1, %cst {dimension_numbers = #tpu.dot_dimension_numbers<[1], [0], [0], [1], [0, 0, 1, 1], [], []>} : vector<48x128xbf16>, vector<128x256xbf16>, vector<48x256xf32> -> vector<48x256xf32>
    %c0_3 = arith.constant 0 : index
    %c0_4 = arith.constant 0 : index
    %3 = vector.load %arg3[%c0_3, %c0_4] : memref<1x256xf32, #tpu.memory_space<vmem>>, vector<1x256xf32>
    %4 = vector.broadcast %3 : vector<1x256xf32> to vector<48x256xf32>
    %5 = arith.addf %2, %4 : vector<48x256xf32>
    %cst_5 = arith.constant 0.000000e+00 : f32
    %6 = vector.broadcast %cst_5 : f32 to vector<48x256xf32>
    %7 = arith.maximumf %5, %6 : vector<48x256xf32>
    %8 = arith.truncf %7 : vector<48x256xf32> to vector<48x256xbf16>
    %c0_6 = arith.constant 0 : index
    %c0_7 = arith.constant 0 : index
    %9 = vector.load %arg4[%c0_6, %c0_7] : memref<256x128xbf16, #tpu.memory_space<vmem>>, vector<256x128xbf16>
    %cst_8 = arith.constant dense<0.000000e+00> : vector<48x128xf32>
    %10 = tpu.matmul %8, %9, %cst_8 {dimension_numbers = #tpu.dot_dimension_numbers<[1], [0], [0], [1], [0, 0, 1, 1], [], []>} : vector<48x256xbf16>, vector<256x128xbf16>, vector<48x128xf32> -> vector<48x128xf32>
    %c0_9 = arith.constant 0 : index
    %c0_10 = arith.constant 0 : index
    %11 = vector.load %arg5[%c0_9, %c0_10] : memref<1x128xf32, #tpu.memory_space<vmem>>, vector<1x128xf32>
    %12 = vector.broadcast %11 : vector<1x128xf32> to vector<48x128xf32>
    %13 = arith.addf %10, %12 : vector<48x128xf32>
    %cst_11 = arith.constant 0.000000e+00 : f32
    %14 = vector.broadcast %cst_11 : f32 to vector<48x128xf32>
    %15 = arith.maximumf %13, %14 : vector<48x128xf32>
    %c0_12 = arith.constant 0 : index
    %c0_13 = arith.constant 0 : index
    %16 = vector.load %arg6[%c0_12, %c0_13] : memref<48x128xf32, #tpu.memory_space<vmem>>, vector<48x128xf32>
    tpu.vector_store %arg6[%c0_12, %c0_13], %15 {strides = array<i32>} : memref<48x128xf32, #tpu.memory_space<vmem>>, vector<48x128xf32>,
    return
  }
  func.func @transform_0(%arg0: i32) -> (i32, i32) {
    %c0_i32 = arith.constant 0 : i32
    %c0_i32_0 = arith.constant 0 : i32
    return %arg0, %c0_i32 : i32, i32
  }
  func.func @transform_1(%arg0: i32) -> (i32, i32) {
    %c0_i32 = arith.constant 0 : i32
    %c0_i32_0 = arith.constant 0 : i32
    %c0_i32_1 = arith.constant 0 : i32
    return %c0_i32, %c0_i32_0 : i32, i32
  }
  func.func @transform_2(%arg0: i32) -> (i32, i32) {
    %c0_i32 = arith.constant 0 : i32
    %c0_i32_0 = arith.constant 0 : i32
    %c0_i32_1 = arith.constant 0 : i32
    return %c0_i32, %c0_i32_0 : i32, i32
  }
  func.func @transform_3(%arg0: i32) -> (i32, i32) {
    %c0_i32 = arith.constant 0 : i32
    %c0_i32_0 = arith.constant 0 : i32
    %c0_i32_1 = arith.constant 0 : i32
    return %c0_i32, %c0_i32_0 : i32, i32
  }
  func.func @transform_4(%arg0: i32) -> (i32, i32) {
    %c0_i32 = arith.constant 0 : i32
    %c0_i32_0 = arith.constant 0 : i32
    %c0_i32_1 = arith.constant 0 : i32
    return %c0_i32, %c0_i32_0 : i32, i32
  }
  func.func @transform_5(%arg0: i32) -> (i32, i32) {
    %c0_i32 = arith.constant 0 : i32
    %c0_i32_0 = arith.constant 0 : i32
    return %arg0, %c0_i32 : i32, i32
  }
}

module attributes {stable_mosaic.version = 11 : i64} {
  func.func @_mlp_resident_kernel(%arg0: i32, %arg1: memref<48x128xbf16, #tpu.memory_space<vmem>>, %arg2: memref<128x256xbf16, #tpu.memory_space<vmem>>, %arg3: memref<1x256xf32, #tpu.memory_space<vmem>>, %arg4: memref<256x128xbf16, #tpu.memory_space<vmem>>, %arg5: memref<1x128xf32, #tpu.memory_space<vmem>>, %arg6: memref<48x128xf32, #tpu.memory_space<vmem>>) attributes {dimension_semantics = [#tpu.dimension_semantics<arbitrary>], iteration_bounds = array<i64: 1>, scalar_prefetch = 0 : i64, scratch_operands = 0 : i64, tpu.core_type = #tpu.core_type<tc>, window_params = [{transform_indices = @transform_0, window_bounds = array<i64: 48, 128>}, {pipeline_mode = #tpu.pipeline_mode<synchronous>, transform_indices = @transform_1, window_bounds = array<i64: 128, 256>}, {pipeline_mode = #tpu.pipeline_mode<synchronous>, transform_indices = @transform_2, window_bounds = array<i64: 1, 256>}, {pipeline_mode = #tpu.pipeline_mode<synchronous>, transform_indices = @transform_3, window_bounds = array<i64: 256, 128>}, {pipeline_mode = #tpu.pipeline_mode<synchronous>, transform_indices = @transform_4, window_bounds = array<i64: 1, 128>}, {transform_indices = @transform_5, window_bounds = array<i64: 48, 128>}]} {
    %c0 = arith.constant 0 : index
    %c0_0 = arith.constant 0 : index
    %0 = vector.load %arg1[%c0, %c0_0] : memref<48x128xbf16, #tpu.memory_space<vmem>>, vector<48x128xbf16>
    %c0_1 = arith.constant 0 : index
    %c0_2 = arith.constant 0 : index
    %1 = vector.load %arg2[%c0_1, %c0_2] : memref<128x256xbf16, #tpu.memory_space<vmem>>, vector<128x256xbf16>
    %cst = arith.constant dense<0.000000e+00> : vector<48x256xf32>
    %2 = tpu.matmul %0, %1, %cst {dimension_numbers = #tpu.dot_dimension_numbers<[1], [0], [0], [1], [0, 0, 1, 1], [], []>} : vector<48x128xbf16>, vector<128x256xbf16>, vector<48x256xf32> -> vector<48x256xf32>
    %c0_3 = arith.constant 0 : index
    %c0_4 = arith.constant 0 : index
    %3 = vector.load %arg3[%c0_3, %c0_4] : memref<1x256xf32, #tpu.memory_space<vmem>>, vector<1x256xf32>
    %4 = vector.broadcast %3 : vector<1x256xf32> to vector<48x256xf32>
    %5 = arith.addf %2, %4 : vector<48x256xf32>
    %cst_5 = arith.constant 0.000000e+00 : f32
    %6 = vector.broadcast %cst_5 : f32 to vector<48x256xf32>
    %7 = arith.maximumf %5, %6 : vector<48x256xf32>
    %8 = arith.truncf %7 : vector<48x256xf32> to vector<48x256xbf16>
    %c0_6 = arith.constant 0 : index
    %c0_7 = arith.constant 0 : index
    %9 = vector.load %arg4[%c0_6, %c0_7] : memref<256x128xbf16, #tpu.memory_space<vmem>>, vector<256x128xbf16>
    %cst_8 = arith.constant dense<0.000000e+00> : vector<48x128xf32>
    %10 = tpu.matmul %8, %9, %cst_8 {dimension_numbers = #tpu.dot_dimension_numbers<[1], [0], [0], [1], [0, 0, 1, 1], [], []>} : vector<48x256xbf16>, vector<256x128xbf16>, vector<48x128xf32> -> vector<48x128xf32>
    %c0_9 = arith.constant 0 : index
    %c0_10 = arith.constant 0 : index
    %11 = vector.load %arg5[%c0_9, %c0_10] : memref<1x128xf32, #tpu.memory_space<vmem>>, vector<1x128xf32>
    %12 = vector.broadcast %11 : vector<1x128xf32> to vector<48x128xf32>
    %13 = arith.addf %10, %12 : vector<48x128xf32>
    %cst_11 = arith.constant 0.000000e+00 : f32
    %14 = vector.broadcast %cst_11 : f32 to vector<48x128xf32>
    %15 = arith.maximumf %13, %14 : vector<48x128xf32>
    %c0_12 = arith.constant 0 : index
    %c0_13 = arith.constant 0 : index
    %16 = vector.load %arg6[%c0_12, %c0_13] : memref<48x128xf32, #tpu.memory_space<vmem>>, vector<48x128xf32>
    tpu.vector_store %arg6[%c0_12, %c0_13], %15 {strides = array<i32>} : memref<48x128xf32, #tpu.memory_space<vmem>>, vector<48x128xf32>,
    return
  }
  func.func @transform_0(%arg0: i32) -> (i32, i32) {
    %c0_i32 = arith.constant 0 : i32
    %c0_i32_0 = arith.constant 0 : i32
    return %arg0, %c0_i32 : i32, i32
  }
  func.func @transform_1(%arg0: i32) -> (i32, i32) {
    %c0_i32 = arith.constant 0 : i32
    %c0_i32_0 = arith.constant 0 : i32
    %c0_i32_1 = arith.constant 0 : i32
    return %c0_i32, %c0_i32_0 : i32, i32
  }
  func.func @transform_2(%arg0: i32) -> (i32, i32) {
    %c0_i32 = arith.constant 0 : i32
    %c0_i32_0 = arith.constant 0 : i32
    %c0_i32_1 = arith.constant 0 : i32
    return %c0_i32, %c0_i32_0 : i32, i32
  }
  func.func @transform_3(%arg0: i32) -> (i32, i32) {
    %c0_i32 = arith.constant 0 : i32
    %c0_i32_0 = arith.constant 0 : i32
    %c0_i32_1 = arith.constant 0 : i32
    return %c0_i32, %c0_i32_0 : i32, i32
  }
  func.func @transform_4(%arg0: i32) -> (i32, i32) {
    %c0_i32 = arith.constant 0 : i32
    %c0_i32_0 = arith.constant 0 : i32
    %c0_i32_1 = arith.constant 0 : i32
    return %c0_i32, %c0_i32_0 : i32, i32
  }
  func.func @transform_5(%arg0: i32) -> (i32, i32) {
    %c0_i32 = arith.constant 0 : i32
    %c0_i32_0 = arith.constant 0 : i32
    return %arg0, %c0_i32 : i32, i32
  }
}

</mosaic_0001>

<llo_original>
// kernel: _mlp_pallas_impl.1
$region0: #{_mlp_pallas_impl.1}
  #allocation0 [shape = 'u32[]', space=smem, size = 0x4, offset = 0x4, fixed_abs, tag = 'smem constant byte address 0x4 - core index']
  #allocation1 [shape = 'u32[144,128]{1,0:T(1,128)}', space=vmem, size = 0x12000, scoped, tag = 'internal scratch']
  %s0 = inlined_call_operand.vmem [shape: bf16[48,128], index: 0, kind: input, shape index: {}]
  %s1 = inlined_call_operand.vmem [shape: bf16[128,256], index: 1, kind: input, shape index: {}]
  %s2 = inlined_call_operand.vmem [shape: f32[1,256], index: 2, kind: input, shape index: {}]
  %s3 = inlined_call_operand.vmem [shape: bf16[256,128], index: 3, kind: input, shape index: {}]
  %s4 = inlined_call_operand.vmem [shape: f32[1,128], index: 4, kind: input, shape index: {}]
  %s5 = inlined_call_operand.hbm [shape: f32[48,128], index: 5, kind: output, shape index: {}]
  %s6 = sld [smem:[#allocation0]]
  $region30: #{_mlp_pallas_impl.1} parent=0
    _
  %s8 = ssub.s32 1, %s6
  %s9 = scalar_select 0, %s8, %s6
  $region1: #{_mlp_pallas_impl.1} parent=0
    #allocation2 [shape = 'u8[24576]{0}', space=vmem, size = 0x6000, scoped, tag = 'output window, operand 0, single buffered']
    #allocation3 [shape = 's32[1]{0}', space=sflag, size = 0x4, scoped, tag = 'scoped memory for _mlp_pallas_impl.1']
    %10 = vsyncpa [#allocation3], 0
    // Predicated region
    $region2: #{_mlp_pallas_impl.1} parent=1 // pred_check
      _
    $region3: #{_mlp_pallas_impl.1} parent=1 // pred_check_branch
      %12 = sbr.rel (0) target = $region5
    $region4: #{_mlp_pallas_impl.1} parent=1 // pred_region
      _
    $region5: #{_mlp_pallas_impl.1} parent=1 // pred_fallthru
      _
    // Predicated region
    $region6: #{_mlp_pallas_impl.1} parent=1 // pred_check
      _
    $region7: #{_mlp_pallas_impl.1} parent=1 // pred_check_branch
      %14 = sbr.rel (0) target = $region9
    $region8: #{_mlp_pallas_impl.1} parent=1 // pred_region
      _
    $region9: #{_mlp_pallas_impl.1} parent=1 // pred_fallthru
      _
    // Predicated region
    $region10: #{_mlp_pallas_impl.1} parent=1 // pred_check
      _
    $region11: #{_mlp_pallas_impl.1} parent=1 // pred_check_branch
      %16 = sbr.rel (0) target = $region13
    $region12: #{_mlp_pallas_impl.1} parent=1 // pred_region
      _
    $region13: #{_mlp_pallas_impl.1} parent=1 // pred_fallthru
      _
    // Predicated region
    $region14: #{_mlp_pallas_impl.1} parent=1 // pred_check
      _
    $region15: #{_mlp_pallas_impl.1} parent=1 // pred_check_branch
      %18 = sbr.rel (0) target = $region17
    $region16: #{_mlp_pallas_impl.1} parent=1 // pred_region
      _
    $region17: #{_mlp_pallas_impl.1} parent=1 // pred_fallthru
      _
    // Predicated region
    $region18: #{_mlp_pallas_impl.1} parent=1 // pred_check
      _
    $region19: #{_mlp_pallas_impl.1} parent=1 // pred_check_branch
      %20 = sbr.rel (0) target = $region21
    $region20: #{_mlp_pallas_impl.1} parent=1 // pred_region
      _
    $region21: #{_mlp_pallas_impl.1} parent=1 // pred_fallthru
      _
    %v22 = vld [vmem:[%s0] sm:$0xf]
    %v23 = vld [vmem:[%s0 + $0x4] sm:$0xf]
    %v24 = vld [vmem:[%s0 + $0x8] sm:$0xf]
    %v25 = vld [vmem:[%s0 + $0xc] sm:$0xf]
    %v26 = vld [vmem:[%s0 + $0x10] sm:$0xf]
    %v27 = vld [vmem:[%s0 + $0x14] sm:$0xf]
    %v28 = vld [vmem:[%s1] sm:$0xff]
    %v29 = vld [vmem:[%s1 + $0x8] sm:$0xff]
    %v30 = vld [vmem:[%s1 + $0x10] sm:$0xff]
    %v31 = vld [vmem:[%s1 + $0x18] sm:$0xff]
    %v32 = vld [vmem:[%s1 + $0x20] sm:$0xff]
    %v33 = vld [vmem:[%s1 + $0x28] sm:$0xff]
    %v34 = vld [vmem:[%s1 + $0x30] sm:$0xff]
    %v35 = vld [vmem:[%s1 + $0x38] sm:$0xff]
    %v36 = vld [vmem:[%s1 + $0x40] sm:$0xff]
    %v37 = vld [vmem:[%s1 + $0x48] sm:$0xff]
    %v38 = vld [vmem:[%s1 + $0x50] sm:$0xff]
    %v39 = vld [vmem:[%s1 + $0x58] sm:$0xff]
    %v40 = vld [vmem:[%s1 + $0x60] sm:$0xff]
    %v41 = vld [vmem:[%s1 + $0x68] sm:$0xff]
    %v42 = vld [vmem:[%s1 + $0x70] sm:$0xff]
    %v43 = vld [vmem:[%s1 + $0x78] sm:$0xff]
    %v44 = vld [vmem:[%s2] sm:$0x3]
    %v46 = vlaneseq
    %v47 = vshrl.u32 %v46, 7
    %v48 = vsub.s32 0, %v47
    %v49 = vrot.slane %v44, %v48
    %v50 = vlaneseq
    %v51 = vshrl.u32 %v50, 7
    %v52 = vsub.s32 1, %v51
    %v53 = vrot.slane %v44, %v52
    %v62 = vunpack.c.l.b16 %v22
    %v63 = vunpack.c.l.b16 %v23
    %v64 = vunpack.c.l.b16 %v24
    %v65 = vunpack.c.l.b16 %v25
    %v66 = vunpack.c.l.b16 %v26
    %v67 = vunpack.c.l.b16 %v27
    %v68 = vpack.c.b16 %v63, %v62
    %v69 = vpack.c.b16 %v65, %v64
    %v70 = vpack.c.b16 %v67, %v66
    %v90 = vunpack.c.l.b16 %v28
    %v91 = vunpack.c.h.b16 %v28
    %v92 = vunpack.c.l.b16 %v29
    %v93 = vunpack.c.h.b16 %v29
    %v94 = vunpack.c.l.b16 %v30
    %v95 = vunpack.c.h.b16 %v30
    %v96 = vunpack.c.l.b16 %v31
    %v97 = vunpack.c.h.b16 %v31
    %v98 = vunpack.c.l.b16 %v32
    %v99 = vunpack.c.h.b16 %v32
    %v100 = vunpack.c.l.b16 %v33
    %v101 = vunpack.c.h.b16 %v33
    %v102 = vunpack.c.l.b16 %v34
    %v103 = vunpack.c.h.b16 %v34
    %v104 = vunpack.c.l.b16 %v35
    %v105 = vunpack.c.h.b16 %v35
    %v106 = vunpack.c.l.b16 %v36
    %v107 = vunpack.c.h.b16 %v36
    %v108 = vunpack.c.l.b16 %v37
    %v109 = vunpack.c.h.b16 %v37
    %v110 = vunpack.c.l.b16 %v38
    %v111 = vunpack.c.h.b16 %v38
    %v112 = vunpack.c.l.b16 %v39
    %v113 = vunpack.c.h.b16 %v39
    %v114 = vunpack.c.l.b16 %v40
    %v115 = vunpack.c.h.b16 %v40
    %v116 = vunpack.c.l.b16 %v41
    %v117 = vunpack.c.h.b16 %v41
    %v118 = vunpack.c.l.b16 %v42
    %v119 = vunpack.c.h.b16 %v42
    %v120 = vunpack.c.l.b16 %v43
    %v121 = vunpack.c.h.b16 %v43
    %v122 = vpack.c.b16 %v92, %v90
    %v123 = vpack.c.b16 %v93, %v91
    %v124 = vpack.c.b16 %v96, %v94
    %v125 = vpack.c.b16 %v97, %v95
    %v126 = vpack.c.b16 %v100, %v98
    %v127 = vpack.c.b16 %v101, %v99
    %v128 = vpack.c.b16 %v104, %v102
    %v129 = vpack.c.b16 %v105, %v103
    %v130 = vpack.c.b16 %v108, %v106
    %v131 = vpack.c.b16 %v109, %v107
    %v132 = vpack.c.b16 %v112, %v110
    %v133 = vpack.c.b16 %v113, %v111
    %v134 = vpack.c.b16 %v116, %v114
    %v135 = vpack.c.b16 %v117, %v115
    %v136 = vpack.c.b16 %v120, %v118
    %v137 = vpack.c.b16 %v121, %v119
    %154 = vmatprep.subr.bf16.mxu0 %v123
    %155 = vmatpush1.bf16.msra.mxu0 %v122
    %156 = vmatprep.subr.bf16.mxu0 %v125
    %157 = vmatpush1.bf16.msra.mxu0 %v124
    %158 = vmatprep.subr.bf16.mxu0 %v127
    %159 = vmatpush1.bf16.msra.mxu0 %v126
    %160 = vmatprep.subr.bf16.mxu0 %v129
    %161 = vmatpush1.bf16.msra.mxu0 %v128
    %162 = vmatprep.subr.bf16.mxu0 %v131
    %163 = vmatpush1.bf16.msra.mxu0 %v130
    %164 = vmatprep.subr.bf16.mxu0 %v133
    %165 = vmatpush1.bf16.msra.mxu0 %v132
    %166 = vmatprep.subr.bf16.mxu0 %v135
    %167 = vmatpush1.bf16.msra.mxu0 %v134
    %168 = vmatprep.subr.bf16.mxu0 %v137
    %169 = vmatpush1.bf16.msra.mxu0 %v136
    %170 = vmatprep.subr.bf16.mxu0 0
    %171 = vmatpush1.bf16.msra.mxu0 0
    %172 = vmatprep.subr.bf16.mxu0 0
    %173 = vmatpush1.bf16.msra.mxu0 0
    %174 = vmatprep.subr.bf16.mxu0 0
    %175 = vmatpush1.bf16.msra.mxu0 0
    %176 = vmatprep.subr.bf16.mxu0 0
    %177 = vmatpush1.bf16.msra.mxu0 0
    %178 = vmatprep.subr.bf16.mxu0 0
    %179 = vmatpush1.bf16.msra.mxu0 0
    %180 = vmatprep.subr.bf16.mxu0 0
    %181 = vmatpush1.bf16.msra.mxu0 0
    %182 = vmatprep.subr.bf16.mxu0 0
    %183 = vmatpush1.bf16.msra.mxu0 0
    %184 = vmatprep.subr.bf16.mxu0 0
    %185 = vmatpush1.bf16.msra.mxu0 0
    %186 = vmatprep.mubr.bf16.mxu0 0
    %187 = vmatmul.mubr.bf16.gmra.mrb[0].mxu0 %v68
    %v188 = vpop.f32.mrb[0].mxu0
    %v189 = vadd.f32 %v49, %v188
    %v190 = vpop.f32.mrb[0].mxu0
    %v191 = vadd.f32 %v53, %v190
    %v192 = vpop.f32.mrb[0].mxu0
    %v193 = vadd.f32 %v49, %v192
    %v194 = vpop.f32.mrb[0].mxu0
    %v195 = vadd.f32 %v53, %v194
    %196 = vmatprep.mubr.bf16.mxu0 0
    %197 = vmatmul.mubr.bf16.gmra.mrb[0].mxu0 %v69
    %v198 = vpop.f32.mrb[0].mxu0
    %v199 = vadd.f32 %v49, %v198
    %v200 = vpop.f32.mrb[0].mxu0
    %v201 = vadd.f32 %v53, %v200
    %v202 = vpop.f32.mrb[0].mxu0
    %v203 = vadd.f32 %v49, %v202
    %v204 = vpop.f32.mrb[0].mxu0
    %v205 = vadd.f32 %v53, %v204
    %206 = vmatprep.mubr.bf16.mxu0 0
    %207 = vmatmul.mubr.bf16.gmra.mrb[0].mxu0 %v70
    %v208 = vpop.f32.mrb[0].mxu0
    %v209 = vadd.f32 %v49, %v208
    %v210 = vpop.f32.mrb[0].mxu0
    %v211 = vadd.f32 %v53, %v210
    %v212 = vpop.f32.mrb[0].mxu0
    %v213 = vadd.f32 %v49, %v212
    %v214 = vpop.f32.mrb[0].mxu0
    %v215 = vadd.f32 %v53, %v214
    %216 = vdwg.mxu0
    %v217 = vmax.f32 %v189, 0.0
    %v218 = vmax.f32 %v191, 0.0
    %v219 = vmax.f32 %v193, 0.0
    %v220 = vmax.f32 %v195, 0.0
    %v221 = vmax.f32 %v199, 0.0
    %v222 = vmax.f32 %v201, 0.0
    %v223 = vmax.f32 %v203, 0.0
    %v224 = vmax.f32 %v205, 0.0
    %v225 = vmax.f32 %v209, 0.0
    %v226 = vmax.f32 %v211, 0.0
    %v227 = vmax.f32 %v213, 0.0
    %v228 = vmax.f32 %v215, 0.0
    %v229 = vpack.c.bf16 %v219, %v217
    %v230 = vpack.c.bf16 %v220, %v218
    %v231 = vpack.c.bf16 %v223, %v221
    %v232 = vpack.c.bf16 %v224, %v222
    %v233 = vpack.c.bf16 %v227, %v225
    %v234 = vpack.c.bf16 %v228, %v226
    %v235 = vld [vmem:[%s3] sm:$0xf]
    %v236 = vld [vmem:[%s3 + $0x4] sm:$0xf]
    %v237 = vld [vmem:[%s3 + $0x8] sm:$0xf]
    %v238 = vld [vmem:[%s3 + $0xc] sm:$0xf]
    %v239 = vld [vmem:[%s3 + $0x10] sm:$0xf]
    %v240 = vld [vmem:[%s3 + $0x14] sm:$0xf]
    %v241 = vld [vmem:[%s3 + $0x18] sm:$0xf]
    %v242 = vld [vmem:[%s3 + $0x1c] sm:$0xf]
    %v243 = vld [vmem:[%s3 + $0x20] sm:$0xf]
    %v244 = vld [vmem:[%s3 + $0x24] sm:$0xf]
    %v245 = vld [vmem:[%s3 + $0x28] sm:$0xf]
    %v246 = vld [vmem:[%s3 + $0x2c] sm:$0xf]
    %v247 = vld [vmem:[%s3 + $0x30] sm:$0xf]
    %v248 = vld [vmem:[%s3 + $0x34] sm:$0xf]
    %v249 = vld [vmem:[%s3 + $0x38] sm:$0xf]
    %v250 = vld [vmem:[%s3 + $0x3c] sm:$0xf]
    %v251 = vld [vmem:[%s3 + $0x40] sm:$0xf]
    %v252 = vld [vmem:[%s3 + $0x44] sm:$0xf]
    %v253 = vld [vmem:[%s3 + $0x48] sm:$0xf]
    %v254 = vld [vmem:[%s3 + $0x4c] sm:$0xf]
    %v255 = vld [vmem:[%s3 + $0x50] sm:$0xf]
    %v256 = vld [vmem:[%s3 + $0x54] sm:$0xf]
    %v257 = vld [vmem:[%s3 + $0x58] sm:$0xf]
    %v258 = vld [vmem:[%s3 + $0x5c] sm:$0xf]
    %v259 = vld [vmem:[%s3 + $0x60] sm:$0xf]
    %v260 = vld [vmem:[%s3 + $0x64] sm:$0xf]
    %v261 = vld [vmem:[%s3 + $0x68] sm:$0xf]
    %v262 = vld [vmem:[%s3 + $0x6c] sm:$0xf]
    %v263 = vld [vmem:[%s3 + $0x70] sm:$0xf]
    %v264 = vld [vmem:[%s3 + $0x74] sm:$0xf]
    %v265 = vld [vmem:[%s3 + $0x78] sm:$0xf]
    %v266 = vld [vmem:[%s3 + $0x7c] sm:$0xf]
    %v267 = vld [vmem:[%s4] sm:$0x1]
    %v269 = vlaneseq
    %v270 = vshrl.u32 %v269, 7
    %v271 = vsub.s32 0, %v270
    %v272 = vrot.slane %v267, %v271
    %v306 = vunpack.c.l.b16 %v235
    %v307 = vunpack.c.l.b16 %v236
    %v308 = vunpack.c.l.b16 %v237
    %v309 = vunpack.c.l.b16 %v238
    %v310 = vunpack.c.l.b16 %v239
    %v311 = vunpack.c.l.b16 %v240
    %v312 = vunpack.c.l.b16 %v241
    %v313 = vunpack.c.l.b16 %v242
    %v314 = vunpack.c.l.b16 %v243
    %v315 = vunpack.c.l.b16 %v244
    %v316 = vunpack.c.l.b16 %v245
    %v317 = vunpack.c.l.b16 %v246
    %v318 = vunpack.c.l.b16 %v247
    %v319 = vunpack.c.l.b16 %v248
    %v320 = vunpack.c.l.b16 %v249
    %v321 = vunpack.c.l.b16 %v250
    %v322 = vunpack.c.l.b16 %v251
    %v323 = vunpack.c.l.b16 %v252
    %v324 = vunpack.c.l.b16 %v253
    %v325 = vunpack.c.l.b16 %v254
    %v326 = vunpack.c.l.b16 %v255
    %v327 = vunpack.c.l.b16 %v256
    %v328 = vunpack.c.l.b16 %v257
    %v329 = vunpack.c.l.b16 %v258
    %v330 = vunpack.c.l.b16 %v259
    %v331 = vunpack.c.l.b16 %v260
    %v332 = vunpack.c.l.b16 %v261
    %v333 = vunpack.c.l.b16 %v262
    %v334 = vunpack.c.l.b16 %v263
    %v335 = vunpack.c.l.b16 %v264
    %v336 = vunpack.c.l.b16 %v265
    %v337 = vunpack.c.l.b16 %v266
    %v338 = vpack.c.b16 %v307, %v306
    %v339 = vpack.c.b16 %v309, %v308
    %v340 = vpack.c.b16 %v311, %v310
    %v341 = vpack.c.b16 %v313, %v312
    %v342 = vpack.c.b16 %v315, %v314
    %v343 = vpack.c.b16 %v317, %v316
    %v344 = vpack.c.b16 %v319, %v318
    %v345 = vpack.c.b16 %v321, %v320
    %v346 = vpack.c.b16 %v323, %v322
    %v347 = vpack.c.b16 %v325, %v324
    %v348 = vpack.c.b16 %v327, %v326
    %v349 = vpack.c.b16 %v329, %v328
    %v350 = vpack.c.b16 %v331, %v330
    %v351 = vpack.c.b16 %v333, %v332
    %v352 = vpack.c.b16 %v335, %v334
    %v353 = vpack.c.b16 %v337, %v336
    %370 = vmatprep.subr.bf16.mxu0 0
    %371 = vmatpush1.bf16.msra.mxu0 %v338
    %372 = vmatprep.subr.bf16.mxu0 0
    %373 = vmatpush1.bf16.msra.mxu0 %v339
    %374 = vmatprep.subr.bf16.mxu0 0
    %375 = vmatpush1.bf16.msra.mxu0 %v340
    %376 = vmatprep.subr.bf16.mxu0 0
    %377 = vmatpush1.bf16.msra.mxu0 %v341
    %378 = vmatprep.subr.bf16.mxu0 0
    %379 = vmatpush1.bf16.msra.mxu0 %v342
    %380 = vmatprep.subr.bf16.mxu0 0
    %381 = vmatpush1.bf16.msra.mxu0 %v343
    %382 = vmatprep.subr.bf16.mxu0 0
    %383 = vmatpush1.bf16.msra.mxu0 %v344
    %384 = vmatprep.subr.bf16.mxu0 0
    %385 = vmatpush1.bf16.msra.mxu0 %v345
    %386 = vmatprep.subr.bf16.mxu0 0
    %387 = vmatpush1.bf16.msra.mxu0 %v346
    %388 = vmatprep.subr.bf16.mxu0 0
    %389 = vmatpush1.bf16.msra.mxu0 %v347
    %390 = vmatprep.subr.bf16.mxu0 0
    %391 = vmatpush1.bf16.msra.mxu0 %v348
    %392 = vmatprep.subr.bf16.mxu0 0
    %393 = vmatpush1.bf16.msra.mxu0 %v349
    %394 = vmatprep.subr.bf16.mxu0 0
    %395 = vmatpush1.bf16.msra.mxu0 %v350
    %396 = vmatprep.subr.bf16.mxu0 0
    %397 = vmatpush1.bf16.msra.mxu0 %v351
    %398 = vmatprep.subr.bf16.mxu0 0
    %399 = vmatpush1.bf16.msra.mxu0 %v352
    %400 = vmatprep.subr.bf16.mxu0 0
    %401 = vmatpush1.bf16.msra.mxu0 %v353
    %402 = vmatprep.mubr.bf16.mxu0 %v230
    %403 = vmatmul.mubr.bf16.gmra.mrb[0].mxu0 %v229
    %v404 = vpop.f32.mrb[0].mxu0
    %v405 = vadd.f32 %v272, %v404
    %v406 = vpop.f32.mrb[0].mxu0
    %v407 = vpop.f32.mrb[0].mxu0
    %v408 = vadd.f32 %v272, %v407
    %v409 = vpop.f32.mrb[0].mxu0
    %410 = vmatprep.mubr.bf16.mxu0 %v232
    %411 = vmatmul.mubr.bf16.gmra.mrb[0].mxu0 %v231
    %v412 = vpop.f32.mrb[0].mxu0
    %v413 = vadd.f32 %v272, %v412
    %v414 = vpop.f32.mrb[0].mxu0
    %v415 = vpop.f32.mrb[0].mxu0
    %v416 = vadd.f32 %v272, %v415
    %v417 = vpop.f32.mrb[0].mxu0
    %418 = vmatprep.mubr.bf16.mxu0 %v234
    %419 = vmatmul.mubr.bf16.gmra.mrb[0].mxu0 %v233
    %v420 = vpop.f32.mrb[0].mxu0
    %v421 = vadd.f32 %v272, %v420
    %v422 = vpop.f32.mrb[0].mxu0
    %v423 = vpop.f32.mrb[0].mxu0
    %v424 = vadd.f32 %v272, %v423
    %v425 = vpop.f32.mrb[0].mxu0
    %426 = vdwg.mxu0
    %v427 = vmax.f32 %v405, 0.0
    %v428 = vmax.f32 %v408, 0.0
    %v429 = vmax.f32 %v413, 0.0
    %v430 = vmax.f32 %v416, 0.0
    %v431 = vmax.f32 %v421, 0.0
    %v432 = vmax.f32 %v424, 0.0
    %433 = vst [vmem:[#allocation2] sm:$0xff] %v427
    %434 = vst [vmem:[#allocation2 + $0x8] sm:$0xff] %v428
    %435 = vst [vmem:[#allocation2 + $0x10] sm:$0xff] %v429
    %436 = vst [vmem:[#allocation2 + $0x18] sm:$0xff] %v430
    %437 = vst [vmem:[#allocation2 + $0x20] sm:$0xff] %v431
    %438 = vst [vmem:[#allocation2 + $0x28] sm:$0xff] %v432
    // Predicated region
    $region22: #{_mlp_pallas_impl.1} parent=1 // pred_check
      _
    $region23: #{_mlp_pallas_impl.1} parent=1 // pred_check_branch
      %440 = sbr.rel (0) target = $region25
    $region24: #{_mlp_pallas_impl.1} parent=1 // pred_region
      %s442 = ssub.s32 768, 768
      %443 = vsyncadd [#allocation3], %s442
      %s444 = sshll.u32 [#allocation2], 4
      %s445 = int_to_ptr.vmem [resolvable:$true] %s444
      %450 = dma.vmem_to_hbm [thread:$0]  %s445, 768, %s5, [#allocation3], 128, 128, 8
    $region25: #{_mlp_pallas_impl.1} parent=1 // pred_fallthru
      _
    // Predicated region
    $region26: #{_mlp_pallas_impl.1} parent=1 // pred_check
      _
    $region27: #{_mlp_pallas_impl.1} parent=1 // pred_check_branch
      %452 = sbr.rel (0) target = $region29
    $region28: #{_mlp_pallas_impl.1} parent=1 // pred_region
      %453 = dma.done [#allocation3], 768
    $region29: #{_mlp_pallas_impl.1} parent=1 // pred_fallthru
      _
    %454 = vsyncpa [#allocation3], 1

// kernel: _mlp_pallas_impl.1
$region0: #{_mlp_pallas_impl.1}
  #allocation0 [shape = 'u32[]', space=smem, size = 0x4, offset = 0x4, fixed_abs, tag = 'smem constant byte address 0x4 - core index']
  #allocation1 [shape = 'u32[144,128]{1,0:T(1,128)}', space=vmem, size = 0x12000, scoped, tag = 'internal scratch']
  %s0 = inlined_call_operand.vmem [shape: bf16[48,128], index: 0, kind: input, shape index: {}]
  %s1 = inlined_call_operand.vmem [shape: bf16[128,256], index: 1, kind: input, shape index: {}]
  %s2 = inlined_call_operand.vmem [shape: f32[1,256], index: 2, kind: input, shape index: {}]
  %s3 = inlined_call_operand.vmem [shape: bf16[256,128], index: 3, kind: input, shape index: {}]
  %s4 = inlined_call_operand.vmem [shape: f32[1,128], index: 4, kind: input, shape index: {}]
  %s5 = inlined_call_operand.hbm [shape: f32[48,128], index: 5, kind: output, shape index: {}]
  %s6 = sld [smem:[#allocation0]]
  $region30: #{_mlp_pallas_impl.1} parent=0
    _
  %s8 = ssub.s32 1, %s6
  %s9 = scalar_select 0, %s8, %s6
  $region1: #{_mlp_pallas_impl.1} parent=0
    #allocation2 [shape = 'u8[24576]{0}', space=vmem, size = 0x6000, scoped, tag = 'output window, operand 0, single buffered']
    #allocation3 [shape = 's32[1]{0}', space=sflag, size = 0x4, scoped, tag = 'scoped memory for _mlp_pallas_impl.1']
    %10 = vsyncpa [#allocation3], 0
    // Predicated region
    $region2: #{_mlp_pallas_impl.1} parent=1 // pred_check
      _
    $region3: #{_mlp_pallas_impl.1} parent=1 // pred_check_branch
      %12 = sbr.rel (0) target = $region5
    $region4: #{_mlp_pallas_impl.1} parent=1 // pred_region
      _
    $region5: #{_mlp_pallas_impl.1} parent=1 // pred_fallthru
      _
    // Predicated region
    $region6: #{_mlp_pallas_impl.1} parent=1 // pred_check
      _
    $region7: #{_mlp_pallas_impl.1} parent=1 // pred_check_branch
      %14 = sbr.rel (0) target = $region9
    $region8: #{_mlp_pallas_impl.1} parent=1 // pred_region
      _
    $region9: #{_mlp_pallas_impl.1} parent=1 // pred_fallthru
      _
    // Predicated region
    $region10: #{_mlp_pallas_impl.1} parent=1 // pred_check
      _
    $region11: #{_mlp_pallas_impl.1} parent=1 // pred_check_branch
      %16 = sbr.rel (0) target = $region13
    $region12: #{_mlp_pallas_impl.1} parent=1 // pred_region
      _
    $region13: #{_mlp_pallas_impl.1} parent=1 // pred_fallthru
      _
    // Predicated region
    $region14: #{_mlp_pallas_impl.1} parent=1 // pred_check
      _
    $region15: #{_mlp_pallas_impl.1} parent=1 // pred_check_branch
      %18 = sbr.rel (0) target = $region17
    $region16: #{_mlp_pallas_impl.1} parent=1 // pred_region
      _
    $region17: #{_mlp_pallas_impl.1} parent=1 // pred_fallthru
      _
    // Predicated region
    $region18: #{_mlp_pallas_impl.1} parent=1 // pred_check
      _
    $region19: #{_mlp_pallas_impl.1} parent=1 // pred_check_branch
      %20 = sbr.rel (0) target = $region21
    $region20: #{_mlp_pallas_impl.1} parent=1 // pred_region
      _
    $region21: #{_mlp_pallas_impl.1} parent=1 // pred_fallthru
      _
    %v22 = vld [vmem:[%s0] sm:$0xf]
    %v23 = vld [vmem:[%s0 + $0x4] sm:$0xf]
    %v24 = vld [vmem:[%s0 + $0x8] sm:$0xf]
    %v25 = vld [vmem:[%s0 + $0xc] sm:$0xf]
    %v26 = vld [vmem:[%s0 + $0x10] sm:$0xf]
    %v27 = vld [vmem:[%s0 + $0x14] sm:$0xf]
    %v28 = vld [vmem:[%s1] sm:$0xff]
    %v29 = vld [vmem:[%s1 + $0x8] sm:$0xff]
    %v30 = vld [vmem:[%s1 + $0x10] sm:$0xff]
    %v31 = vld [vmem:[%s1 + $0x18] sm:$0xff]
    %v32 = vld [vmem:[%s1 + $0x20] sm:$0xff]
    %v33 = vld [vmem:[%s1 + $0x28] sm:$0xff]
    %v34 = vld [vmem:[%s1 + $0x30] sm:$0xff]
    %v35 = vld [vmem:[%s1 + $0x38] sm:$0xff]
    %v36 = vld [vmem:[%s1 + $0x40] sm:$0xff]
    %v37 = vld [vmem:[%s1 + $0x48] sm:$0xff]
    %v38 = vld [vmem:[%s1 + $0x50] sm:$0xff]
    %v39 = vld [vmem:[%s1 + $0x58] sm:$0xff]
    %v40 = vld [vmem:[%s1 + $0x60] sm:$0xff]
    %v41 = vld [vmem:[%s1 + $0x68] sm:$0xff]
    %v42 = vld [vmem:[%s1 + $0x70] sm:$0xff]
    %v43 = vld [vmem:[%s1 + $0x78] sm:$0xff]
    %v44 = vld [vmem:[%s2] sm:$0x3]
    %v46 = vlaneseq
    %v47 = vshrl.u32 %v46, 7
    %v48 = vsub.s32 0, %v47
    %v49 = vrot.slane %v44, %v48
    %v50 = vlaneseq
    %v51 = vshrl.u32 %v50, 7
    %v52 = vsub.s32 1, %v51
    %v53 = vrot.slane %v44, %v52
    %v62 = vunpack.c.l.b16 %v22
    %v63 = vunpack.c.l.b16 %v23
    %v64 = vunpack.c.l.b16 %v24
    %v65 = vunpack.c.l.b16 %v25
    %v66 = vunpack.c.l.b16 %v26
    %v67 = vunpack.c.l.b16 %v27
    %v68 = vpack.c.b16 %v63, %v62
    %v69 = vpack.c.b16 %v65, %v64
    %v70 = vpack.c.b16 %v67, %v66
    %v90 = vunpack.c.l.b16 %v28
    %v91 = vunpack.c.h.b16 %v28
    %v92 = vunpack.c.l.b16 %v29
    %v93 = vunpack.c.h.b16 %v29
    %v94 = vunpack.c.l.b16 %v30
    %v95 = vunpack.c.h.b16 %v30
    %v96 = vunpack.c.l.b16 %v31
    %v97 = vunpack.c.h.b16 %v31
    %v98 = vunpack.c.l.b16 %v32
    %v99 = vunpack.c.h.b16 %v32
    %v100 = vunpack.c.l.b16 %v33
    %v101 = vunpack.c.h.b16 %v33
    %v102 = vunpack.c.l.b16 %v34
    %v103 = vunpack.c.h.b16 %v34
    %v104 = vunpack.c.l.b16 %v35
    %v105 = vunpack.c.h.b16 %v35
    %v106 = vunpack.c.l.b16 %v36
    %v107 = vunpack.c.h.b16 %v36
    %v108 = vunpack.c.l.b16 %v37
    %v109 = vunpack.c.h.b16 %v37
    %v110 = vunpack.c.l.b16 %v38
    %v111 = vunpack.c.h.b16 %v38
    %v112 = vunpack.c.l.b16 %v39
    %v113 = vunpack.c.h.b16 %v39
    %v114 = vunpack.c.l.b16 %v40
    %v115 = vunpack.c.h.b16 %v40
    %v116 = vunpack.c.l.b16 %v41
    %v117 = vunpack.c.h.b16 %v41
    %v118 = vunpack.c.l.b16 %v42
    %v119 = vunpack.c.h.b16 %v42
    %v120 = vunpack.c.l.b16 %v43
    %v121 = vunpack.c.h.b16 %v43
    %v122 = vpack.c.b16 %v92, %v90
    %v123 = vpack.c.b16 %v93, %v91
    %v124 = vpack.c.b16 %v96, %v94
    %v125 = vpack.c.b16 %v97, %v95
    %v126 = vpack.c.b16 %v100, %v98
    %v127 = vpack.c.b16 %v101, %v99
    %v128 = vpack.c.b16 %v104, %v102
    %v129 = vpack.c.b16 %v105, %v103
    %v130 = vpack.c.b16 %v108, %v106
    %v131 = vpack.c.b16 %v109, %v107
    %v132 = vpack.c.b16 %v112, %v110
    %v133 = vpack.c.b16 %v113, %v111
    %v134 = vpack.c.b16 %v116, %v114
    %v135 = vpack.c.b16 %v117, %v115
    %v136 = vpack.c.b16 %v120, %v118
    %v137 = vpack.c.b16 %v121, %v119
    %154 = vmatprep.subr.bf16.mxu0 %v123
    %155 = vmatpush1.bf16.msra.mxu0 %v122
    %156 = vmatprep.subr.bf16.mxu0 %v125
    %157 = vmatpush1.bf16.msra.mxu0 %v124
    %158 = vmatprep.subr.bf16.mxu0 %v127
    %159 = vmatpush1.bf16.msra.mxu0 %v126
    %160 = vmatprep.subr.bf16.mxu0 %v129
    %161 = vmatpush1.bf16.msra.mxu0 %v128
    %162 = vmatprep.subr.bf16.mxu0 %v131
    %163 = vmatpush1.bf16.msra.mxu0 %v130
    %164 = vmatprep.subr.bf16.mxu0 %v133
    %165 = vmatpush1.bf16.msra.mxu0 %v132
    %166 = vmatprep.subr.bf16.mxu0 %v135
    %167 = vmatpush1.bf16.msra.mxu0 %v134
    %168 = vmatprep.subr.bf16.mxu0 %v137
    %169 = vmatpush1.bf16.msra.mxu0 %v136
    %170 = vmatprep.subr.bf16.mxu0 0
    %171 = vmatpush1.bf16.msra.mxu0 0
    %172 = vmatprep.subr.bf16.mxu0 0
    %173 = vmatpush1.bf16.msra.mxu0 0
    %174 = vmatprep.subr.bf16.mxu0 0
    %175 = vmatpush1.bf16.msra.mxu0 0
    %176 = vmatprep.subr.bf16.mxu0 0
    %177 = vmatpush1.bf16.msra.mxu0 0
    %178 = vmatprep.subr.bf16.mxu0 0
    %179 = vmatpush1.bf16.msra.mxu0 0
    %180 = vmatprep.subr.bf16.mxu0 0
    %181 = vmatpush1.bf16.msra.mxu0 0
    %182 = vmatprep.subr.bf16.mxu0 0
    %183 = vmatpush1.bf16.msra.mxu0 0
    %184 = vmatprep.subr.bf16.mxu0 0
    %185 = vmatpush1.bf16.msra.mxu0 0
    %186 = vmatprep.mubr.bf16.mxu0 0
    %187 = vmatmul.mubr.bf16.gmra.mrb[0].mxu0 %v68
    %v188 = vpop.f32.mrb[0].mxu0
    %v189 = vadd.f32 %v49, %v188
    %v190 = vpop.f32.mrb[0].mxu0
    %v191 = vadd.f32 %v53, %v190
    %v192 = vpop.f32.mrb[0].mxu0
    %v193 = vadd.f32 %v49, %v192
    %v194 = vpop.f32.mrb[0].mxu0
    %v195 = vadd.f32 %v53, %v194
    %196 = vmatprep.mubr.bf16.mxu0 0
    %197 = vmatmul.mubr.bf16.gmra.mrb[0].mxu0 %v69
    %v198 = vpop.f32.mrb[0].mxu0
    %v199 = vadd.f32 %v49, %v198
    %v200 = vpop.f32.mrb[0].mxu0
    %v201 = vadd.f32 %v53, %v200
    %v202 = vpop.f32.mrb[0].mxu0
    %v203 = vadd.f32 %v49, %v202
    %v204 = vpop.f32.mrb[0].mxu0
    %v205 = vadd.f32 %v53, %v204
    %206 = vmatprep.mubr.bf16.mxu0 0
    %207 = vmatmul.mubr.bf16.gmra.mrb[0].mxu0 %v70
    %v208 = vpop.f32.mrb[0].mxu0
    %v209 = vadd.f32 %v49, %v208
    %v210 = vpop.f32.mrb[0].mxu0
    %v211 = vadd.f32 %v53, %v210
    %v212 = vpop.f32.mrb[0].mxu0
    %v213 = vadd.f32 %v49, %v212
    %v214 = vpop.f32.mrb[0].mxu0
    %v215 = vadd.f32 %v53, %v214
    %216 = vdwg.mxu0
    %v217 = vmax.f32 %v189, 0.0
    %v218 = vmax.f32 %v191, 0.0
    %v219 = vmax.f32 %v193, 0.0
    %v220 = vmax.f32 %v195, 0.0
    %v221 = vmax.f32 %v199, 0.0
    %v222 = vmax.f32 %v201, 0.0
    %v223 = vmax.f32 %v203, 0.0
    %v224 = vmax.f32 %v205, 0.0
    %v225 = vmax.f32 %v209, 0.0
    %v226 = vmax.f32 %v211, 0.0
    %v227 = vmax.f32 %v213, 0.0
    %v228 = vmax.f32 %v215, 0.0
    %v229 = vpack.c.bf16 %v219, %v217
    %v230 = vpack.c.bf16 %v220, %v218
    %v231 = vpack.c.bf16 %v223, %v221
    %v232 = vpack.c.bf16 %v224, %v222
    %v233 = vpack.c.bf16 %v227, %v225
    %v234 = vpack.c.bf16 %v228, %v226
    %v235 = vld [vmem:[%s3] sm:$0xf]
    %v236 = vld [vmem:[%s3 + $0x4] sm:$0xf]
    %v237 = vld [vmem:[%s3 + $0x8] sm:$0xf]
    %v238 = vld [vmem:[%s3 + $0xc] sm:$0xf]
    %v239 = vld [vmem:[%s3 + $0x10] sm:$0xf]
    %v240 = vld [vmem:[%s3 + $0x14] sm:$0xf]
    %v241 = vld [vmem:[%s3 + $0x18] sm:$0xf]
    %v242 = vld [vmem:[%s3 + $0x1c] sm:$0xf]
    %v243 = vld [vmem:[%s3 + $0x20] sm:$0xf]
    %v244 = vld [vmem:[%s3 + $0x24] sm:$0xf]
    %v245 = vld [vmem:[%s3 + $0x28] sm:$0xf]
    %v246 = vld [vmem:[%s3 + $0x2c] sm:$0xf]
    %v247 = vld [vmem:[%s3 + $0x30] sm:$0xf]
    %v248 = vld [vmem:[%s3 + $0x34] sm:$0xf]
    %v249 = vld [vmem:[%s3 + $0x38] sm:$0xf]
    %v250 = vld [vmem:[%s3 + $0x3c] sm:$0xf]
    %v251 = vld [vmem:[%s3 + $0x40] sm:$0xf]
    %v252 = vld [vmem:[%s3 + $0x44] sm:$0xf]
    %v253 = vld [vmem:[%s3 + $0x48] sm:$0xf]
    %v254 = vld [vmem:[%s3 + $0x4c] sm:$0xf]
    %v255 = vld [vmem:[%s3 + $0x50] sm:$0xf]
    %v256 = vld [vmem:[%s3 + $0x54] sm:$0xf]
    %v257 = vld [vmem:[%s3 + $0x58] sm:$0xf]
    %v258 = vld [vmem:[%s3 + $0x5c] sm:$0xf]
    %v259 = vld [vmem:[%s3 + $0x60] sm:$0xf]
    %v260 = vld [vmem:[%s3 + $0x64] sm:$0xf]
    %v261 = vld [vmem:[%s3 + $0x68] sm:$0xf]
    %v262 = vld [vmem:[%s3 + $0x6c] sm:$0xf]
    %v263 = vld [vmem:[%s3 + $0x70] sm:$0xf]
    %v264 = vld [vmem:[%s3 + $0x74] sm:$0xf]
    %v265 = vld [vmem:[%s3 + $0x78] sm:$0xf]
    %v266 = vld [vmem:[%s3 + $0x7c] sm:$0xf]
    %v267 = vld [vmem:[%s4] sm:$0x1]
    %v269 = vlaneseq
    %v270 = vshrl.u32 %v269, 7
    %v271 = vsub.s32 0, %v270
    %v272 = vrot.slane %v267, %v271
    %v306 = vunpack.c.l.b16 %v235
    %v307 = vunpack.c.l.b16 %v236
    %v308 = vunpack.c.l.b16 %v237
    %v309 = vunpack.c.l.b16 %v238
    %v310 = vunpack.c.l.b16 %v239
    %v311 = vunpack.c.l.b16 %v240
    %v312 = vunpack.c.l.b16 %v241
    %v313 = vunpack.c.l.b16 %v242
    %v314 = vunpack.c.l.b16 %v243
    %v315 = vunpack.c.l.b16 %v244
    %v316 = vunpack.c.l.b16 %v245
    %v317 = vunpack.c.l.b16 %v246
    %v318 = vunpack.c.l.b16 %v247
    %v319 = vunpack.c.l.b16 %v248
    %v320 = vunpack.c.l.b16 %v249
    %v321 = vunpack.c.l.b16 %v250
    %v322 = vunpack.c.l.b16 %v251
    %v323 = vunpack.c.l.b16 %v252
    %v324 = vunpack.c.l.b16 %v253
    %v325 = vunpack.c.l.b16 %v254
    %v326 = vunpack.c.l.b16 %v255
    %v327 = vunpack.c.l.b16 %v256
    %v328 = vunpack.c.l.b16 %v257
    %v329 = vunpack.c.l.b16 %v258
    %v330 = vunpack.c.l.b16 %v259
    %v331 = vunpack.c.l.b16 %v260
    %v332 = vunpack.c.l.b16 %v261
    %v333 = vunpack.c.l.b16 %v262
    %v334 = vunpack.c.l.b16 %v263
    %v335 = vunpack.c.l.b16 %v264
    %v336 = vunpack.c.l.b16 %v265
    %v337 = vunpack.c.l.b16 %v266
    %v338 = vpack.c.b16 %v307, %v306
    %v339 = vpack.c.b16 %v309, %v308
    %v340 = vpack.c.b16 %v311, %v310
    %v341 = vpack.c.b16 %v313, %v312
    %v342 = vpack.c.b16 %v315, %v314
    %v343 = vpack.c.b16 %v317, %v316
    %v344 = vpack.c.b16 %v319, %v318
    %v345 = vpack.c.b16 %v321, %v320
    %v346 = vpack.c.b16 %v323, %v322
    %v347 = vpack.c.b16 %v325, %v324
    %v348 = vpack.c.b16 %v327, %v326
    %v349 = vpack.c.b16 %v329, %v328
    %v350 = vpack.c.b16 %v331, %v330
    %v351 = vpack.c.b16 %v333, %v332
    %v352 = vpack.c.b16 %v335, %v334
    %v353 = vpack.c.b16 %v337, %v336
    %370 = vmatprep.subr.bf16.mxu0 0
    %371 = vmatpush1.bf16.msra.mxu0 %v338
    %372 = vmatprep.subr.bf16.mxu0 0
    %373 = vmatpush1.bf16.msra.mxu0 %v339
    %374 = vmatprep.subr.bf16.mxu0 0
    %375 = vmatpush1.bf16.msra.mxu0 %v340
    %376 = vmatprep.subr.bf16.mxu0 0
    %377 = vmatpush1.bf16.msra.mxu0 %v341
    %378 = vmatprep.subr.bf16.mxu0 0
    %379 = vmatpush1.bf16.msra.mxu0 %v342
    %380 = vmatprep.subr.bf16.mxu0 0
    %381 = vmatpush1.bf16.msra.mxu0 %v343
    %382 = vmatprep.subr.bf16.mxu0 0
    %383 = vmatpush1.bf16.msra.mxu0 %v344
    %384 = vmatprep.subr.bf16.mxu0 0
    %385 = vmatpush1.bf16.msra.mxu0 %v345
    %386 = vmatprep.subr.bf16.mxu0 0
    %387 = vmatpush1.bf16.msra.mxu0 %v346
    %388 = vmatprep.subr.bf16.mxu0 0
    %389 = vmatpush1.bf16.msra.mxu0 %v347
    %390 = vmatprep.subr.bf16.mxu0 0
    %391 = vmatpush1.bf16.msra.mxu0 %v348
    %392 = vmatprep.subr.bf16.mxu0 0
    %393 = vmatpush1.bf16.msra.mxu0 %v349
    %394 = vmatprep.subr.bf16.mxu0 0
    %395 = vmatpush1.bf16.msra.mxu0 %v350
    %396 = vmatprep.subr.bf16.mxu0 0
    %397 = vmatpush1.bf16.msra.mxu0 %v351
    %398 = vmatprep.subr.bf16.mxu0 0
    %399 = vmatpush1.bf16.msra.mxu0 %v352
    %400 = vmatprep.subr.bf16.mxu0 0
    %401 = vmatpush1.bf16.msra.mxu0 %v353
    %402 = vmatprep.mubr.bf16.mxu0 %v230
    %403 = vmatmul.mubr.bf16.gmra.mrb[0].mxu0 %v229
    %v404 = vpop.f32.mrb[0].mxu0
    %v405 = vadd.f32 %v272, %v404
    %v406 = vpop.f32.mrb[0].mxu0
    %v407 = vpop.f32.mrb[0].mxu0
    %v408 = vadd.f32 %v272, %v407
    %v409 = vpop.f32.mrb[0].mxu0
    %410 = vmatprep.mubr.bf16.mxu0 %v232
    %411 = vmatmul.mubr.bf16.gmra.mrb[0].mxu0 %v231
    %v412 = vpop.f32.mrb[0].mxu0
    %v413 = vadd.f32 %v272, %v412
    %v414 = vpop.f32.mrb[0].mxu0
    %v415 = vpop.f32.mrb[0].mxu0
    %v416 = vadd.f32 %v272, %v415
    %v417 = vpop.f32.mrb[0].mxu0
    %418 = vmatprep.mubr.bf16.mxu0 %v234
    %419 = vmatmul.mubr.bf16.gmra.mrb[0].mxu0 %v233
    %v420 = vpop.f32.mrb[0].mxu0
    %v421 = vadd.f32 %v272, %v420
    %v422 = vpop.f32.mrb[0].mxu0
    %v423 = vpop.f32.mrb[0].mxu0
    %v424 = vadd.f32 %v272, %v423
    %v425 = vpop.f32.mrb[0].mxu0
    %426 = vdwg.mxu0
    %v427 = vmax.f32 %v405, 0.0
    %v428 = vmax.f32 %v408, 0.0
    %v429 = vmax.f32 %v413, 0.0
    %v430 = vmax.f32 %v416, 0.0
    %v431 = vmax.f32 %v421, 0.0
    %v432 = vmax.f32 %v424, 0.0
    %433 = vst [vmem:[#allocation2] sm:$0xff] %v427
    %434 = vst [vmem:[#allocation2 + $0x8] sm:$0xff] %v428
    %435 = vst [vmem:[#allocation2 + $0x10] sm:$0xff] %v429
    %436 = vst [vmem:[#allocation2 + $0x18] sm:$0xff] %v430
    %437 = vst [vmem:[#allocation2 + $0x20] sm:$0xff] %v431
    %438 = vst [vmem:[#allocation2 + $0x28] sm:$0xff] %v432
    // Predicated region
    $region22: #{_mlp_pallas_impl.1} parent=1 // pred_check
      _
    $region23: #{_mlp_pallas_impl.1} parent=1 // pred_check_branch
      %440 = sbr.rel (0) target = $region25
    $region24: #{_mlp_pallas_impl.1} parent=1 // pred_region
      %s442 = ssub.s32 768, 768
      %443 = vsyncadd [#allocation3], %s442
      %s444 = sshll.u32 [#allocation2], 4
      %s445 = int_to_ptr.vmem [resolvable:$true] %s444
      %450 = dma.vmem_to_hbm [thread:$0]  %s445, 768, %s5, [#allocation3], 128, 128, 8
    $region25: #{_mlp_pallas_impl.1} parent=1 // pred_fallthru
      _
    // Predicated region
    $region26: #{_mlp_pallas_impl.1} parent=1 // pred_check
      _
    $region27: #{_mlp_pallas_impl.1} parent=1 // pred_check_branch
      %452 = sbr.rel (0) target = $region29
    $region28: #{_mlp_pallas_impl.1} parent=1 // pred_region
      %453 = dma.done [#allocation3], 768
    $region29: #{_mlp_pallas_impl.1} parent=1 // pred_fallthru
      _
    %454 = vsyncpa [#allocation3], 1

</llo_original>
